<compile_context>
chip_gen: v7x
topology: tpu7x:2x2x1
jax: 0.10.0
libtpu: 0.0.40
codegen_flags: <defaults>
</compile_context>

<pallas_src>
import math
from functools import partial

import jax
import jax.numpy as jnp
from jax.experimental import pallas as pl
from jax.experimental.pallas import tpu as pltpu


# ---------------------------------------------------------------------------
# Kernel: one M-block of the position-wise FFN + residual + LayerNorm
# ---------------------------------------------------------------------------
def _ffn_ln_kernel(x_ref, w1_ref, w2_ref, o_ref):
    # x arrives in f32; cast to the weight dtype only for the MXU feed
    # (cast is fused here instead of a separate HBM pass in the wrapper).
    xb = x_ref[...].astype(w1_ref.dtype)              # [bm, D] MXU feed

    # fc[0] (no bias) + ReLU — MXU matmul, f32 accumulation.
    h = jnp.dot(xb, w1_ref[...], preferred_element_type=jnp.float32)
    h = jnp.maximum(h, 0.0)

    # fc[2] (no bias) + residual (residual read straight from the f32 ref,
    # keeping the f32 temp's live range short).
    y = jnp.dot(h.astype(w2_ref.dtype), w2_ref[...],
                preferred_element_type=jnp.float32)
    y = y + x_ref[...]

    # LayerNorm(input_dim): fresh nn.LayerNorm => weight=1, bias=0, eps=1e-5.
    # Single-pass reductions: mean = s1/D, var = s2/D - mean^2 (clamped >= 0).
    inv_d = 1.0 / y.shape[-1]
    s1 = jnp.sum(y, axis=-1, keepdims=True)
    s2 = jnp.sum(y * y, axis=-1, keepdims=True)
    mean = s1 * inv_d
    var = jnp.maximum(s2 * inv_d - mean * mean, 0.0)
    o_ref[...] = ((y - mean) * jax.lax.rsqrt(var + 1e-5)).astype(o_ref.dtype)


# ---------------------------------------------------------------------------
# Wrapper
# ---------------------------------------------------------------------------
def _round_up(x, m):
    return ((x + m - 1) // m) * m


def poswise_ffn_forward(params, inputs, *, d_ff=1, block_m=512,
                        compute_dtype=jnp.bfloat16, out_dtype=jnp.float32,
                        interpret=False):
    """inputs: [..., D] -> [..., D].  params: {'w1': [D, d_ff*D], 'w2': [d_ff*D, D]}."""
    lead = inputs.shape[:-1]
    D = inputs.shape[-1]
    H = d_ff * D
    assert params["w1"].shape == (D, H), params["w1"].shape
    assert params["w2"].shape == (H, D), params["w2"].shape

    M = int(math.prod(lead)) if lead else 1
    x = inputs.reshape(M, D).astype(jnp.float32)       # residual/LN math is f32

    # Block over M: multiple of 16 (bf16 sublane packing), big enough to get
    # near HBM roofline (<= block_m), small enough that the grid has ~8 steps
    # (>= 3-4 blocks per TensorCore on v7x so prefetch depth isn't zero).
    bm = max(16, min(block_m, _round_up(pl.cdiv(M, 8), 16)))
    bm = _round_up(bm, 16)
    grid = (pl.cdiv(M, bm),)                            # ragged last block: masked stores

    # Weight casts: only if the caller didn't pre-convert (hoist this per-call tax).
    w1 = params["w1"] if params["w1"].dtype == compute_dtype else params["w1"].astype(compute_dtype)
    w2 = params["w2"] if params["w2"].dtype == compute_dtype else params["w2"].astype(compute_dtype)

    out = pl.pallas_call(
        _ffn_ln_kernel,
        out_shape=jax.ShapeDtypeStruct((M, D), out_dtype),
        grid=grid,
        in_specs=[
            pl.BlockSpec((bm, D), lambda i: (i, 0)),    # activations: tiled over M (f32)
            pl.BlockSpec((D, H), lambda i: (0, 0)),     # W1: VMEM-resident
            pl.BlockSpec((H, D), lambda i: (0, 0)),     # W2: VMEM-resident
        ],
        out_specs=pl.BlockSpec((bm, D), lambda i: (i, 0)),
        compiler_params=pltpu.CompilerParams(
            dimension_semantics=("parallel",)),
        interpret=interpret,
    )(x, w1, w2)

    return out.reshape(*lead, D) if lead else out.reshape(D)


# ---------------------------------------------------------------------------
if __name__ == "__main__":
    # Position-wise FFN over [batch, neg_sampling, input_dim]; input_dim is
    # lane-dense (128) so output stores are unmasked full-lane vst's.
    B, N, D = 4, 128, 128
    d_ff = 1

    key = jax.random.PRNGKey(0)
    k_x, k_w1, k_w2 = jax.random.split(key, 3)
    inputs = jax.random.normal(k_x, (B, N, D), jnp.float32)
    params_f32 = {
        "w1": jax.random.normal(k_w1, (D, d_ff * D), jnp.float32) / math.sqrt(D),
        "w2": jax.random.normal(k_w2, (d_ff * D, D), jnp.float32) / math.sqrt(d_ff * D),
    }
    # Pre-convert weights once (no per-call HBM cast pass).
    params = {k: v.astype(jnp.bfloat16) for k, v in params_f32.items()}

    fwd = jax.jit(partial(poswise_ffn_forward, d_ff=d_ff, block_m=512))
    out = fwd(params, inputs)
    jax.block_until_ready(out)

    # Pure-JAX reference with the same bf16 MXU feed / f32 math.
    xb = inputs.reshape(-1, D).astype(jnp.bfloat16)
    h = jnp.maximum(jnp.dot(xb, params["w1"], preferred_element_type=jnp.float32), 0.0)
    y = jnp.dot(h.astype(jnp.bfloat16), params["w2"], preferred_element_type=jnp.float32)
    y = y + inputs.reshape(-1, D)
    mean = jnp.mean(y, axis=-1, keepdims=True)
    var = jnp.mean((y - mean) ** 2, axis=-1, keepdims=True)
    ref = ((y - mean) * jax.lax.rsqrt(var + 1e-5)).reshape(B, N, D)

    assert out.shape == (B, N, D), out.shape
    assert bool(jnp.all(jnp.isfinite(out)))
    assert bool(jnp.allclose(out, ref, atol=3e-2, rtol=3e-2)), \
        float(jnp.max(jnp.abs(out - ref)))
    print("KERNEL_OK")
</pallas_src>

<mosaic_0001>
module attributes {stable_mosaic.version = 11 : i64} {
  func.func @_ffn_ln_kernel(%arg0: i32, %arg1: memref<64x128xf32, #tpu.memory_space<vmem>>, %arg2: memref<128x128xbf16, #tpu.memory_space<vmem>>, %arg3: memref<128x128xbf16, #tpu.memory_space<vmem>>, %arg4: memref<64x128xf32, #tpu.memory_space<vmem>>) attributes {dimension_semantics = [#tpu.dimension_semantics<parallel>], iteration_bounds = array<i64: 8>, scalar_prefetch = 0 : i64, scratch_operands = 0 : i64, tpu.core_type = #tpu.core_type<tc>, window_params = [{transform_indices = @transform_0, window_bounds = array<i64: 64, 128>}, {pipeline_mode = #tpu.pipeline_mode<synchronous>, transform_indices = @transform_1, window_bounds = array<i64: 128, 128>}, {pipeline_mode = #tpu.pipeline_mode<synchronous>, transform_indices = @transform_2, window_bounds = array<i64: 128, 128>}, {transform_indices = @transform_3, window_bounds = array<i64: 64, 128>}]} {
    %c0 = arith.constant 0 : index
    %c0_0 = arith.constant 0 : index
    %0 = vector.load %arg1[%c0, %c0_0] : memref<64x128xf32, #tpu.memory_space<vmem>>, vector<64x128xf32>
    %1 = arith.truncf %0 : vector<64x128xf32> to vector<64x128xbf16>
    %c0_1 = arith.constant 0 : index
    %c0_2 = arith.constant 0 : index
    %2 = vector.load %arg2[%c0_1, %c0_2] : memref<128x128xbf16, #tpu.memory_space<vmem>>, vector<128x128xbf16>
    %cst = arith.constant dense<0.000000e+00> : vector<64x128xf32>
    %3 = tpu.matmul %1, %2, %cst {dimension_numbers = #tpu.dot_dimension_numbers<[1], [0], [0], [1], [0, 0, 1, 1], [], []>} : vector<64x128xbf16>, vector<128x128xbf16>, vector<64x128xf32> -> vector<64x128xf32>
    %cst_3 = arith.constant 0.000000e+00 : f32
    %4 = vector.broadcast %cst_3 : f32 to vector<64x128xf32>
    %5 = arith.maximumf %3, %4 : vector<64x128xf32>
    %6 = arith.truncf %5 : vector<64x128xf32> to vector<64x128xbf16>
    %c0_4 = arith.constant 0 : index
    %c0_5 = arith.constant 0 : index
    %7 = vector.load %arg3[%c0_4, %c0_5] : memref<128x128xbf16, #tpu.memory_space<vmem>>, vector<128x128xbf16>
    %cst_6 = arith.constant dense<0.000000e+00> : vector<64x128xf32>
    %8 = tpu.matmul %6, %7, %cst_6 {dimension_numbers = #tpu.dot_dimension_numbers<[1], [0], [0], [1], [0, 0, 1, 1], [], []>} : vector<64x128xbf16>, vector<128x128xbf16>, vector<64x128xf32> -> vector<64x128xf32>
    %c0_7 = arith.constant 0 : index
    %c0_8 = arith.constant 0 : index
    %9 = vector.load %arg1[%c0_7, %c0_8] : memref<64x128xf32, #tpu.memory_space<vmem>>, vector<64x128xf32>
    %10 = arith.addf %8, %9 : vector<64x128xf32>
    %cst_9 = arith.constant dense<0.000000e+00> : vector<64xf32>
    %11 = vector.multi_reduction <add>, %10, %cst_9 [1] : vector<64x128xf32> to vector<64xf32>
    %12 = vector.shape_cast %11 : vector<64xf32> to vector<64x1xf32>
    %13 = arith.mulf %10, %10 : vector<64x128xf32>
    %cst_10 = arith.constant dense<0.000000e+00> : vector<64xf32>
    %14 = vector.multi_reduction <add>, %13, %cst_10 [1] : vector<64x128xf32> to vector<64xf32>
    %15 = vector.shape_cast %14 : vector<64xf32> to vector<64x1xf32>
    %cst_11 = arith.constant 7.812500e-03 : f32
    %16 = vector.broadcast %cst_11 : f32 to vector<64x1xf32>
    %17 = arith.mulf %12, %16 : vector<64x1xf32>
    %cst_12 = arith.constant 7.812500e-03 : f32
    %18 = vector.broadcast %cst_12 : f32 to vector<64x1xf32>
    %19 = arith.mulf %15, %18 : vector<64x1xf32>
    %20 = arith.mulf %17, %17 : vector<64x1xf32>
    %21 = arith.subf %19, %20 : vector<64x1xf32>
    %cst_13 = arith.constant 0.000000e+00 : f32
    %22 = vector.broadcast %cst_13 : f32 to vector<64x1xf32>
    %23 = arith.maximumf %21, %22 : vector<64x1xf32>
    %24 = vector.broadcast %17 : vector<64x1xf32> to vector<64x128xf32>
    %25 = arith.subf %10, %24 : vector<64x128xf32>
    %cst_14 = arith.constant 9.99999974E-6 : f32
    %26 = vector.broadcast %cst_14 : f32 to vector<64x1xf32>
    %27 = arith.addf %23, %26 : vector<64x1xf32>
    %28 = math.rsqrt %27 : vector<64x1xf32>
    %29 = vector.broadcast %28 : vector<64x1xf32> to vector<64x128xf32>
    %30 = arith.mulf %25, %29 : vector<64x128xf32>
    %c0_15 = arith.constant 0 : index
    %c0_16 = arith.constant 0 : index
    %31 = vector.load %arg4[%c0_15, %c0_16] : memref<64x128xf32, #tpu.memory_space<vmem>>, vector<64x128xf32>
    tpu.vector_store %arg4[%c0_15, %c0_16], %30 {strides = array<i32>} : memref<64x128xf32, #tpu.memory_space<vmem>>, vector<64x128xf32>,
    return
  }
  func.func @transform_0(%arg0: i32) -> (i32, i32) {
    %c0_i32 = arith.constant 0 : i32
    %c0_i32_0 = arith.constant 0 : i32
    return %arg0, %c0_i32 : i32, i32
  }
  func.func @transform_1(%arg0: i32) -> (i32, i32) {
    %c0_i32 = arith.constant 0 : i32
    %c0_i32_0 = arith.constant 0 : i32
    %c0_i32_1 = arith.constant 0 : i32
    return %c0_i32, %c0_i32_0 : i32, i32
  }
  func.func @transform_2(%arg0: i32) -> (i32, i32) {
    %c0_i32 = arith.constant 0 : i32
    %c0_i32_0 = arith.constant 0 : i32
    %c0_i32_1 = arith.constant 0 : i32
    return %c0_i32, %c0_i32_0 : i32, i32
  }
  func.func @transform_3(%arg0: i32) -> (i32, i32) {
    %c0_i32 = arith.constant 0 : i32
    %c0_i32_0 = arith.constant 0 : i32
    return %arg0, %c0_i32 : i32, i32
  }
}

</mosaic_0001>

<llo_original>
// kernel: poswise_ffn_forward.1
$region0: #{poswise_ffn_forward.1}
  #allocation0 [shape = 'u32[]', space=smem, size = 0x4, offset = 0x4, fixed_abs, tag = 'smem constant byte address 0x4 - core index']
  #allocation1 [shape = 'u32[144,128]{1,0:T(1,128)}', space=vmem, size = 0x12000, scoped, tag = 'internal scratch']
  %s0 = inlined_call_operand.hbm [shape: f32[512,128], index: 0, kind: input, shape index: {}]
  %s1 = inlined_call_operand.hbm [shape: bf16[128,128], index: 1, kind: input, shape index: {}]
  %s2 = inlined_call_operand.hbm [shape: bf16[128,128], index: 2, kind: input, shape index: {}]
  %s3 = inlined_call_operand.hbm [shape: f32[512,128], index: 3, kind: output, shape index: {}]
  %s4 = sld [smem:[#allocation0]]
  $region57: #{poswise_ffn_forward.1} parent=0
    _
  %s6 = ssub.s32 1, %s4
  %s7 = scalar_select 0, %s6, %s4
  $region1: #{poswise_ffn_forward.1} parent=0
    #allocation2 [shape = 'u8[65536]{0}', space=vmem, size = 0x10000, scoped, tag = 'input window, operand 0']
    #allocation3 [shape = 's32[2]{0}', space=sflag, size = 0x8, scoped, tag = 'scoped memory for poswise_ffn_forward.1']
    #allocation4 [shape = 's32[2]{0}', space=sflag, size = 0x8, scoped, tag = 'scoped memory for poswise_ffn_forward.1']
    #allocation5 [shape = 'u8[32768]{0}', space=vmem, size = 0x8000, scoped, tag = 'input window, operand 1, single buffered']
    #allocation6 [shape = 's32[1]{0}', space=sflag, size = 0x4, scoped, tag = 'scoped memory for poswise_ffn_forward.1']
    #allocation7 [shape = 'u8[32768]{0}', space=vmem, size = 0x8000, scoped, tag = 'input window, operand 2, single buffered']
    #allocation8 [shape = 'u8[65536]{0}', space=vmem, size = 0x10000, scoped, tag = 'output window, operand 0']
    %8 = vsyncpa [#allocation3], 0
    %s9 = scalar_lea.sflag [#allocation3], 1
    %10 = vsyncpa %s9, 0
    %11 = vsyncpa [#allocation6], 0
    %12 = vsyncpa [#allocation4], 0
    %s13 = scalar_lea.sflag [#allocation4], 1
    %14 = vsyncpa %s13, 0
    loop: start=0, step=1, limit=10
    $region2: #{poswise_ffn_forward.1} parent=1 // loop_pre_header
      _
    $region3: #{poswise_ffn_forward.1} parent=1 // loop_header
      %s16 = sphi 0, %s20
      %p17 = scmp.ge.s32.totalorder %s16, 10
      %s26 = sphi 0, %s28
      %s29 = sphi 0, %s26
      %s30 = sphi 0, %s29
      %s46 = sphi 0, %s30
      %s50 = sphi 0, %s50
      %s52 = sphi 0, %s50
      %s53 = sphi 0, %s52
      %s67 = sphi 0, %s53
      %s71 = sphi 0, %s71
      %s73 = sphi 0, %s71
      %s74 = sphi 0, %s73
      %s88 = sphi 0, %s74
      %s94 = sphi 0, %s96
      %s97 = sphi 0, %s94
      %s98 = sphi 0, %s97
      %s114 = sphi 0, %s98
    $region4: #{poswise_ffn_forward.1} parent=1 // loop_header_branch
      %19 = sbr.rel (%p17) target = $region8
    $region5: #{poswise_ffn_forward.1} parent=1 // loop_body
      %s21 = ssub.s32 %s16, 1
      %s22 = ssub.s32 %s16, 2
      %s23 = sadd.s32 %s16, 1
      %s24 = ssub.s32 %s16, %s23
      %p25 = scmp.eq.s32.totalorder %s24, 0
      %s27 = sadd.s32 %s26, 1
      %s28 = scalar_select %p25, %s26, %s27
      %p31 = pneg %p25
      %p32 = scmp.eq.s32.totalorder %s16, 7
      %p33 = por %p31, %p32
      %p34 = scmp.ne.s32.totalorder %s26, %s29
      %p35 = scmp.eq.s32.totalorder %s16, 0
      %p36 = por %p34, %p35
      %p37 = scmp.ne.s32.totalorder %s26, %s29
      %p38 = scmp.eq.s32.totalorder %s21, 7
      %p39 = por %p37, %p38
      %p40 = scmp.ne.s32.totalorder %s29, %s30
      %p41 = scmp.eq.s32.totalorder %s21, 0
      %p42 = por %p40, %p41
      %p43 = scmp.ne.s32.totalorder %s29, %s30
      %p44 = scmp.eq.s32.totalorder %s22, 7
      %p45 = por %p43, %p44
      %p47 = scmp.ne.s32.totalorder %s30, %s46
      %p48 = scmp.eq.s32.totalorder %s22, 0
      %p49 = por %p47, %p48
      %s51 = sadd.s32 %s50, 1
      %p54 = scmp.eq.s32.totalorder %s16, 7
      %p55 = scmp.ne.s32.totalorder %s50, %s52
      %p56 = scmp.eq.s32.totalorder %s16, 0
      %p57 = por %p55, %p56
      %p58 = scmp.ne.s32.totalorder %s50, %s52
      %p59 = scmp.eq.s32.totalorder %s21, 7
      %p60 = por %p58, %p59
      %p61 = scmp.ne.s32.totalorder %s52, %s53
      %p62 = scmp.eq.s32.totalorder %s21, 0
      %p63 = por %p61, %p62
      %p64 = scmp.ne.s32.totalorder %s52, %s53
      %p65 = scmp.eq.s32.totalorder %s22, 7
      %p66 = por %p64, %p65
      %p68 = scmp.ne.s32.totalorder %s53, %s67
      %p69 = scmp.eq.s32.totalorder %s22, 0
      %p70 = por %p68, %p69
      %s72 = sadd.s32 %s71, 1
      %p75 = scmp.eq.s32.totalorder %s16, 7
      %p76 = scmp.ne.s32.totalorder %s71, %s73
      %p77 = scmp.eq.s32.totalorder %s16, 0
      %p78 = por %p76, %p77
      %p79 = scmp.ne.s32.totalorder %s71, %s73
      %p80 = scmp.eq.s32.totalorder %s21, 7
      %p81 = por %p79, %p80
      %p82 = scmp.ne.s32.totalorder %s73, %s74
      %p83 = scmp.eq.s32.totalorder %s21, 0
      %p84 = por %p82, %p83
      %p85 = scmp.ne.s32.totalorder %s73, %s74
      %p86 = scmp.eq.s32.totalorder %s22, 7
      %p87 = por %p85, %p86
      %p89 = scmp.ne.s32.totalorder %s74, %s88
      %p90 = scmp.eq.s32.totalorder %s22, 0
      %p91 = por %p89, %p90
      %s92 = ssub.s32 %s16, %s23
      %p93 = scmp.eq.s32.totalorder %s92, 0
      %s95 = sadd.s32 %s94, 1
      %s96 = scalar_select %p93, %s94, %s95
      %p99 = pneg %p93
      %p100 = scmp.eq.s32.totalorder %s16, 7
      %p101 = por %p99, %p100
      %p102 = scmp.ne.s32.totalorder %s94, %s97
      %p103 = scmp.eq.s32.totalorder %s16, 0
      %p104 = por %p102, %p103
      %p105 = scmp.ne.s32.totalorder %s94, %s97
      %p106 = scmp.eq.s32.totalorder %s21, 7
      %p107 = por %p105, %p106
      %p108 = scmp.ne.s32.totalorder %s97, %s98
      %p109 = scmp.eq.s32.totalorder %s21, 0
      %p110 = por %p108, %p109
      %p111 = scmp.ne.s32.totalorder %s97, %s98
      %p112 = scmp.eq.s32.totalorder %s22, 7
      %p113 = por %p111, %p112
      %p115 = scmp.ne.s32.totalorder %s98, %s114
      %p116 = scmp.eq.s32.totalorder %s22, 0
      %p117 = por %p115, %p116
      %p118 = scmp.le.s32.totalorder 1, %s16
      %p119 = scmp.lt.s32.totalorder %s16, 9
      %p120 = pnand %p118, %p119
      %p121 = pneg %p120
      // Predicated region
      $region9: #{poswise_ffn_forward.1} parent=5 // pred_check
        _
      $region10: #{poswise_ffn_forward.1} parent=5 // pred_check_branch
        %123 = sbr.rel (%p120) target = $region12
      $region11: #{poswise_ffn_forward.1} parent=5 // pred_region
        %s124 = ssub.s32 %s16, 1
        // Predicated region
        $region13: #{poswise_ffn_forward.1} parent=11 // pred_check
          %p125 = pneg %p63
        $region14: #{poswise_ffn_forward.1} parent=11 // pred_check_branch
          %127 = sbr.rel (%p125) target = $region16
        $region15: #{poswise_ffn_forward.1} parent=11 // pred_region
          %s129 = ssub.s32 1024, 1024
          %130 = vsyncadd [#allocation6], %s129
          %s131 = sshll.u32 [#allocation5], 4
          %s132 = int_to_ptr.vmem [resolvable:$true] %s131
          %137 = dma.hbm_to_vmem [thread:$0]  %s1, 1024, %s132, [#allocation6], 64, 64, 4
        $region16: #{poswise_ffn_forward.1} parent=11 // pred_fallthru
          _
        // Predicated region
        $region17: #{poswise_ffn_forward.1} parent=11 // pred_check
          %p138 = pneg %p84
        $region18: #{poswise_ffn_forward.1} parent=11 // pred_check_branch
          %140 = sbr.rel (%p138) target = $region20
        $region19: #{poswise_ffn_forward.1} parent=11 // pred_region
          %s142 = ssub.s32 1024, 1024
          %143 = vsyncadd [#allocation6], %s142
          %s144 = sshll.u32 [#allocation7], 4
          %s145 = int_to_ptr.vmem [resolvable:$true] %s144
          %150 = dma.hbm_to_vmem [thread:$0]  %s2, 1024, %s145, [#allocation6], 64, 64, 4
        $region20: #{poswise_ffn_forward.1} parent=11 // pred_fallthru
          _
      $region12: #{poswise_ffn_forward.1} parent=5 // pred_fallthru
        _
      %p151 = scmp.lt.s32.totalorder %s16, 8
      // Predicated region
      $region21: #{poswise_ffn_forward.1} parent=5 // pred_check
        %p152 = pneg %p151
      $region22: #{poswise_ffn_forward.1} parent=5 // pred_check_branch
        %154 = sbr.rel (%p152) target = $region24
      $region23: #{poswise_ffn_forward.1} parent=5 // pred_region
        // Predicated region
        $region25: #{poswise_ffn_forward.1} parent=23 // pred_check
          %p155 = pneg %p36
        $region26: #{poswise_ffn_forward.1} parent=23 // pred_check_branch
          %157 = sbr.rel (%p155) target = $region28
        $region27: #{poswise_ffn_forward.1} parent=23 // pred_region
          %s158 = sand.u32 %s26, 1
          %s159 = scalar_lea.sflag [#allocation3], %s158
          %s160 = sand.u32 %s26, 1
          %s161 = smul.addr %s160, 64
          %s162 = scalar_lea.vmem [#allocation2], %s161
          %s163 = smul.u32 8, %s16
          %s165 = ssub.s32 1024, 1024
          %166 = vsyncadd %s159, %s165
          %s167 = smul.addr %s163, 128
          %s168 = scalar_lea.hbm %s0, %s167
          %s169 = sshll.u32 %s162, 4
          %s170 = int_to_ptr.vmem [resolvable:$true] %s169
          %175 = dma.hbm_to_vmem [thread:$0]  %s168, 1024, %s170, %s159, 128, 128, 8
        $region28: #{poswise_ffn_forward.1} parent=23 // pred_fallthru
          _
      $region24: #{poswise_ffn_forward.1} parent=5 // pred_fallthru
        _
      %p176 = scmp.le.s32.totalorder 1, %s16
      %p177 = scmp.lt.s32.totalorder %s16, 9
      %p178 = pnand %p176, %p177
      %p179 = pneg %p178
      // Predicated region
      $region29: #{poswise_ffn_forward.1} parent=5 // pred_check
        _
      $region30: #{poswise_ffn_forward.1} parent=5 // pred_check_branch
        %181 = sbr.rel (%p178) target = $region32
      $region31: #{poswise_ffn_forward.1} parent=5 // pred_region
        %s182 = ssub.s32 %s16, 1
        %s183 = sand.u32 %s29, 1
        %s184 = scalar_lea.sflag [#allocation3], %s183
        %s185 = sand.u32 %s29, 1
        %s186 = smul.addr %s185, 64
        %s187 = scalar_lea.vmem [#allocation2], %s186
        // Predicated region
        $region33: #{poswise_ffn_forward.1} parent=31 // pred_check
          %p188 = pneg %p42
        $region34: #{poswise_ffn_forward.1} parent=31 // pred_check_branch
          %190 = sbr.rel (%p188) target = $region36
        $region35: #{poswise_ffn_forward.1} parent=31 // pred_region
          %191 = dma.done %s184, 1024
        $region36: #{poswise_ffn_forward.1} parent=31 // pred_fallthru
          _
        // Predicated region
        $region37: #{poswise_ffn_forward.1} parent=31 // pred_check
          %p192 = pneg %p63
        $region38: #{poswise_ffn_forward.1} parent=31 // pred_check_branch
          %194 = sbr.rel (%p192) target = $region40
        $region39: #{poswise_ffn_forward.1} parent=31 // pred_region
          %195 = dma.done [#allocation6], 1024
        $region40: #{poswise_ffn_forward.1} parent=31 // pred_fallthru
          _
        // Predicated region
        $region41: #{poswise_ffn_forward.1} parent=31 // pred_check
          %p196 = pneg %p84
        $region42: #{poswise_ffn_forward.1} parent=31 // pred_check_branch
          %198 = sbr.rel (%p196) target = $region44
        $region43: #{poswise_ffn_forward.1} parent=31 // pred_region
          %199 = dma.done [#allocation6], 1024
        $region44: #{poswise_ffn_forward.1} parent=31 // pred_fallthru
          _
        %s200 = sand.u32 %s29, 1
        %s201 = scalar_lea.sflag [#allocation3], %s200
        %s202 = sand.u32 %s29, 1
        %s203 = smul.addr %s202, 64
        %s204 = scalar_lea.vmem [#allocation2], %s203
        %p205 = pneg %p42
        %p206 = pneg %p39
        %p207 = pneg %p63
        %p208 = pneg %p60
        %p209 = pneg %p84
        %p210 = pneg %p81
        %p211 = pneg %p110
        %p212 = pneg %p107
        %s213 = sand.u32 %s97, 1
        %s214 = scalar_lea.sflag [#allocation4], %s213
        %s215 = sand.u32 %s97, 1
        %s216 = smul.addr %s215, 64
        %s217 = scalar_lea.vmem [#allocation8], %s216
        %s218 = smul.u32 8, %s21
        %s219 = smul.u32 8, %s21
        %v221 = vld [vmem:[%s187] sm:$0xff]
        %v222 = vld [vmem:[%s187 + $0x8] sm:$0xff]
        %v223 = vld [vmem:[%s187 + $0x10] sm:$0xff]
        %v224 = vld [vmem:[%s187 + $0x18] sm:$0xff]
        %v225 = vld [vmem:[%s187 + $0x20] sm:$0xff]
        %v226 = vld [vmem:[%s187 + $0x28] sm:$0xff]
        %v227 = vld [vmem:[%s187 + $0x30] sm:$0xff]
        %v228 = vld [vmem:[%s187 + $0x38] sm:$0xff]
        %v229 = vpack.c.bf16 %v222, %v221
        %v230 = vpack.c.bf16 %v224, %v223
        %v231 = vpack.c.bf16 %v226, %v225
        %v232 = vpack.c.bf16 %v228, %v227
        %v233 = vld [vmem:[#allocation5] sm:$0xf]
        %v234 = vld [vmem:[#allocation5 + $0x4] sm:$0xf]
        %v235 = vld [vmem:[#allocation5 + $0x8] sm:$0xf]
        %v236 = vld [vmem:[#allocation5 + $0xc] sm:$0xf]
        %v237 = vld [vmem:[#allocation5 + $0x10] sm:$0xf]
        %v238 = vld [vmem:[#allocation5 + $0x14] sm:$0xf]
        %v239 = vld [vmem:[#allocation5 + $0x18] sm:$0xf]
        %v240 = vld [vmem:[#allocation5 + $0x1c] sm:$0xf]
        %v241 = vld [vmem:[#allocation5 + $0x20] sm:$0xf]
        %v242 = vld [vmem:[#allocation5 + $0x24] sm:$0xf]
        %v243 = vld [vmem:[#allocation5 + $0x28] sm:$0xf]
        %v244 = vld [vmem:[#allocation5 + $0x2c] sm:$0xf]
        %v245 = vld [vmem:[#allocation5 + $0x30] sm:$0xf]
        %v246 = vld [vmem:[#allocation5 + $0x34] sm:$0xf]
        %v247 = vld [vmem:[#allocation5 + $0x38] sm:$0xf]
        %v248 = vld [vmem:[#allocation5 + $0x3c] sm:$0xf]
        %v265 = vunpack.c.l.b16 %v233
        %v266 = vunpack.c.l.b16 %v234
        %v267 = vunpack.c.l.b16 %v235
        %v268 = vunpack.c.l.b16 %v236
        %v269 = vunpack.c.l.b16 %v237
        %v270 = vunpack.c.l.b16 %v238
        %v271 = vunpack.c.l.b16 %v239
        %v272 = vunpack.c.l.b16 %v240
        %v273 = vunpack.c.l.b16 %v241
        %v274 = vunpack.c.l.b16 %v242
        %v275 = vunpack.c.l.b16 %v243
        %v276 = vunpack.c.l.b16 %v244
        %v277 = vunpack.c.l.b16 %v245
        %v278 = vunpack.c.l.b16 %v246
        %v279 = vunpack.c.l.b16 %v247
        %v280 = vunpack.c.l.b16 %v248
        %v281 = vpack.c.b16 %v266, %v265
        %v282 = vpack.c.b16 %v268, %v267
        %v283 = vpack.c.b16 %v270, %v269
        %v284 = vpack.c.b16 %v272, %v271
        %v285 = vpack.c.b16 %v274, %v273
        %v286 = vpack.c.b16 %v276, %v275
        %v287 = vpack.c.b16 %v278, %v277
        %v288 = vpack.c.b16 %v280, %v279
        %297 = vmatprep.subr.bf16.mxu0 0
        %298 = vmatpush1.bf16.msra.mxu0 %v281
        %299 = vmatprep.subr.bf16.mxu0 0
        %300 = vmatpush1.bf16.msra.mxu0 %v282
        %301 = vmatprep.subr.bf16.mxu0 0
        %302 = vmatpush1.bf16.msra.mxu0 %v283
        %303 = vmatprep.subr.bf16.mxu0 0
        %304 = vmatpush1.bf16.msra.mxu0 %v284
        %305 = vmatprep.subr.bf16.mxu0 0
        %306 = vmatpush1.bf16.msra.mxu0 %v285
        %307 = vmatprep.subr.bf16.mxu0 0
        %308 = vmatpush1.bf16.msra.mxu0 %v286
        %309 = vmatprep.subr.bf16.mxu0 0
        %310 = vmatpush1.bf16.msra.mxu0 %v287
        %311 = vmatprep.subr.bf16.mxu0 0
        %312 = vmatpush1.bf16.msra.mxu0 %v288
        %313 = vmatprep.subr.bf16.mxu0 0
        %314 = vmatpush1.bf16.msra.mxu0 0
        %315 = vmatprep.subr.bf16.mxu0 0
        %316 = vmatpush1.bf16.msra.mxu0 0
        %317 = vmatprep.subr.bf16.mxu0 0
        %318 = vmatpush1.bf16.msra.mxu0 0
        %319 = vmatprep.subr.bf16.mxu0 0
        %320 = vmatpush1.bf16.msra.mxu0 0
        %321 = vmatprep.subr.bf16.mxu0 0
        %322 = vmatpush1.bf16.msra.mxu0 0
        %323 = vmatprep.subr.bf16.mxu0 0
        %324 = vmatpush1.bf16.msra.mxu0 0
        %325 = vmatprep.subr.bf16.mxu0 0
        %326 = vmatpush1.bf16.msra.mxu0 0
        %327 = vmatprep.subr.bf16.mxu0 0
        %328 = vmatpush1.bf16.msra.mxu0 0
        %329 = vmatprep.mubr.bf16.mxu0 0
        %330 = vmatmul.mubr.bf16.gmra.mrb[0].mxu0 %v229
        %v331 = vpop.f32.mrb[0].mxu0
        %v332 = vadd.f32 0.0, %v331
        %v333 = vpop.f32.mrb[0].mxu0
        %v334 = vpop.f32.mrb[0].mxu0
        %v335 = vadd.f32 0.0, %v334
        %v336 = vpop.f32.mrb[0].mxu0
        %337 = vmatprep.mubr.bf16.mxu0 0
        %338 = vmatmul.mubr.bf16.gmra.mrb[0].mxu0 %v230
        %v339 = vpop.f32.mrb[0].mxu0
        %v340 = vadd.f32 0.0, %v339
        %v341 = vpop.f32.mrb[0].mxu0
        %v342 = vpop.f32.mrb[0].mxu0
        %v343 = vadd.f32 0.0, %v342
        %v344 = vpop.f32.mrb[0].mxu0
        %345 = vmatprep.mubr.bf16.mxu0 0
        %346 = vmatmul.mubr.bf16.gmra.mrb[0].mxu0 %v231
        %v347 = vpop.f32.mrb[0].mxu0
        %v348 = vadd.f32 0.0, %v347
        %v349 = vpop.f32.mrb[0].mxu0
        %v350 = vpop.f32.mrb[0].mxu0
        %v351 = vadd.f32 0.0, %v350
        %v352 = vpop.f32.mrb[0].mxu0
        %353 = vmatprep.mubr.bf16.mxu0 0
        %354 = vmatmul.mubr.bf16.gmra.mrb[0].mxu0 %v232
        %v355 = vpop.f32.mrb[0].mxu0
        %v356 = vadd.f32 0.0, %v355
        %v357 = vpop.f32.mrb[0].mxu0
        %v358 = vpop.f32.mrb[0].mxu0
        %v359 = vadd.f32 0.0, %v358
        %v360 = vpop.f32.mrb[0].mxu0
        %361 = vdwg.mxu0
        %v362 = vmax.f32 %v332, 0.0
        %v363 = vmax.f32 %v335, 0.0
        %v364 = vmax.f32 %v340, 0.0
        %v365 = vmax.f32 %v343, 0.0
        %v366 = vmax.f32 %v348, 0.0
        %v367 = vmax.f32 %v351, 0.0
        %v368 = vmax.f32 %v356, 0.0
        %v369 = vmax.f32 %v359, 0.0
        %v370 = vpack.c.bf16 %v363, %v362
        %v371 = vpack.c.bf16 %v365, %v364
        %v372 = vpack.c.bf16 %v367, %v366
        %v373 = vpack.c.bf16 %v369, %v368
        %v374 = vld [vmem:[#allocation7] sm:$0xf]
        %v375 = vld [vmem:[#allocation7 + $0x4] sm:$0xf]
        %v376 = vld [vmem:[#allocation7 + $0x8] sm:$0xf]
        %v377 = vld [vmem:[#allocation7 + $0xc] sm:$0xf]
        %v378 = vld [vmem:[#allocation7 + $0x10] sm:$0xf]
        %v379 = vld [vmem:[#allocation7 + $0x14] sm:$0xf]
        %v380 = vld [vmem:[#allocation7 + $0x18] sm:$0xf]
        %v381 = vld [vmem:[#allocation7 + $0x1c] sm:$0xf]
        %v382 = vld [vmem:[#allocation7 + $0x20] sm:$0xf]
        %v383 = vld [vmem:[#allocation7 + $0x24] sm:$0xf]
        %v384 = vld [vmem:[#allocation7 + $0x28] sm:$0xf]
        %v385 = vld [vmem:[#allocation7 + $0x2c] sm:$0xf]
        %v386 = vld [vmem:[#allocation7 + $0x30] sm:$0xf]
        %v387 = vld [vmem:[#allocation7 + $0x34] sm:$0xf]
        %v388 = vld [vmem:[#allocation7 + $0x38] sm:$0xf]
        %v389 = vld [vmem:[#allocation7 + $0x3c] sm:$0xf]
        %v406 = vunpack.c.l.b16 %v374
        %v407 = vunpack.c.l.b16 %v375
        %v408 = vunpack.c.l.b16 %v376
        %v409 = vunpack.c.l.b16 %v377
        %v410 = vunpack.c.l.b16 %v378
        %v411 = vunpack.c.l.b16 %v379
        %v412 = vunpack.c.l.b16 %v380
        %v413 = vunpack.c.l.b16 %v381
        %v414 = vunpack.c.l.b16 %v382
        %v415 = vunpack.c.l.b16 %v383
        %v416 = vunpack.c.l.b16 %v384
        %v417 = vunpack.c.l.b16 %v385
        %v418 = vunpack.c.l.b16 %v386
        %v419 = vunpack.c.l.b16 %v387
        %v420 = vunpack.c.l.b16 %v388
        %v421 = vunpack.c.l.b16 %v389
        %v422 = vpack.c.b16 %v407, %v406
        %v423 = vpack.c.b16 %v409, %v408
        %v424 = vpack.c.b16 %v411, %v410
        %v425 = vpack.c.b16 %v413, %v412
        %v426 = vpack.c.b16 %v415, %v414
        %v427 = vpack.c.b16 %v417, %v416
        %v428 = vpack.c.b16 %v419, %v418
        %v429 = vpack.c.b16 %v421, %v420
        %438 = vmatprep.subr.bf16.mxu0 0
        %439 = vmatpush1.bf16.msra.mxu0 %v422
        %440 = vmatprep.subr.bf16.mxu0 0
        %441 = vmatpush1.bf16.msra.mxu0 %v423
        %442 = vmatprep.subr.bf16.mxu0 0
        %443 = vmatpush1.bf16.msra.mxu0 %v424
        %444 = vmatprep.subr.bf16.mxu0 0
        %445 = vmatpush1.bf16.msra.mxu0 %v425
        %446 = vmatprep.subr.bf16.mxu0 0
        %447 = vmatpush1.bf16.msra.mxu0 %v426
        %448 = vmatprep.subr.bf16.mxu0 0
        %449 = vmatpush1.bf16.msra.mxu0 %v427
        %450 = vmatprep.subr.bf16.mxu0 0
        %451 = vmatpush1.bf16.msra.mxu0 %v428
        %452 = vmatprep.subr.bf16.mxu0 0
        %453 = vmatpush1.bf16.msra.mxu0 %v429
        %454 = vmatprep.subr.bf16.mxu0 0
        %455 = vmatpush1.bf16.msra.mxu0 0
        %456 = vmatprep.subr.bf16.mxu0 0
        %457 = vmatpush1.bf16.msra.mxu0 0
        %458 = vmatprep.subr.bf16.mxu0 0
        %459 = vmatpush1.bf16.msra.mxu0 0
        %460 = vmatprep.subr.bf16.mxu0 0
        %461 = vmatpush1.bf16.msra.mxu0 0
        %462 = vmatprep.subr.bf16.mxu0 0
        %463 = vmatpush1.bf16.msra.mxu0 0
        %464 = vmatprep.subr.bf16.mxu0 0
        %465 = vmatpush1.bf16.msra.mxu0 0
        %466 = vmatprep.subr.bf16.mxu0 0
        %467 = vmatpush1.bf16.msra.mxu0 0
        %468 = vmatprep.subr.bf16.mxu0 0
        %469 = vmatpush1.bf16.msra.mxu0 0
        %470 = vmatprep.mubr.bf16.mxu0 0
        %471 = vmatmul.mubr.bf16.gmra.mrb[0].mxu0 %v370
        %v472 = vpop.f32.mrb[0].mxu0
        %v473 = vadd.f32 %v221, %v472
        %v474 = vpop.f32.mrb[0].mxu0
        %v475 = vpop.f32.mrb[0].mxu0
        %v476 = vadd.f32 %v222, %v475
        %v477 = vpop.f32.mrb[0].mxu0
        %478 = vmatprep.mubr.bf16.mxu0 0
        %479 = vmatmul.mubr.bf16.gmra.mrb[0].mxu0 %v371
        %v480 = vpop.f32.mrb[0].mxu0
        %v481 = vadd.f32 %v223, %v480
        %v482 = vpop.f32.mrb[0].mxu0
        %v483 = vpop.f32.mrb[0].mxu0
        %v484 = vadd.f32 %v224, %v483
        %v485 = vpop.f32.mrb[0].mxu0
        %486 = vmatprep.mubr.bf16.mxu0 0
        %487 = vmatmul.mubr.bf16.gmra.mrb[0].mxu0 %v372
        %v488 = vpop.f32.mrb[0].mxu0
        %v489 = vadd.f32 %v225, %v488
        %v490 = vpop.f32.mrb[0].mxu0
        %v491 = vpop.f32.mrb[0].mxu0
        %v492 = vadd.f32 %v226, %v491
        %v493 = vpop.f32.mrb[0].mxu0
        %494 = vmatprep.mubr.bf16.mxu0 0
        %495 = vmatmul.mubr.bf16.gmra.mrb[0].mxu0 %v373
        %v496 = vpop.f32.mrb[0].mxu0
        %v497 = vadd.f32 %v227, %v496
        %v498 = vpop.f32.mrb[0].mxu0
        %v499 = vpop.f32.mrb[0].mxu0
        %v500 = vadd.f32 %v228, %v499
        %v501 = vpop.f32.mrb[0].mxu0
        %502 = vdwg.mxu0
        %503 = vadd.xlane.f32.xlu0 %v473
        %v504 = vpop.xlane.xlu0 %503
        %505 = vadd.xlane.f32.xlu0 %v476
        %v506 = vpop.xlane.xlu0 %505
        %507 = vadd.xlane.f32.xlu0 %v481
        %v508 = vpop.xlane.xlu0 %507
        %509 = vadd.xlane.f32.xlu0 %v484
        %v510 = vpop.xlane.xlu0 %509
        %511 = vadd.xlane.f32.xlu0 %v489
        %v512 = vpop.xlane.xlu0 %511
        %513 = vadd.xlane.f32.xlu0 %v492
        %v514 = vpop.xlane.xlu0 %513
        %515 = vadd.xlane.f32.xlu0 %v497
        %v516 = vpop.xlane.xlu0 %515
        %517 = vadd.xlane.f32.xlu0 %v500
        %v518 = vpop.xlane.xlu0 %517
        %v519 = vmul.f32 %v473, %v473
        %v520 = vmul.f32 %v476, %v476
        %v521 = vmul.f32 %v481, %v481
        %v522 = vmul.f32 %v484, %v484
        %v523 = vmul.f32 %v489, %v489
        %v524 = vmul.f32 %v492, %v492
        %v525 = vmul.f32 %v497, %v497
        %v526 = vmul.f32 %v500, %v500
        %527 = vadd.xlane.f32.xlu0 %v519
        %v528 = vpop.xlane.xlu0 %527
        %529 = vadd.xlane.f32.xlu0 %v520
        %v530 = vpop.xlane.xlu0 %529
        %531 = vadd.xlane.f32.xlu0 %v521
        %v532 = vpop.xlane.xlu0 %531
        %533 = vadd.xlane.f32.xlu0 %v522
        %v534 = vpop.xlane.xlu0 %533
        %535 = vadd.xlane.f32.xlu0 %v523
        %v536 = vpop.xlane.xlu0 %535
        %537 = vadd.xlane.f32.xlu0 %v524
        %v538 = vpop.xlane.xlu0 %537
        %539 = vadd.xlane.f32.xlu0 %v525
        %v540 = vpop.xlane.xlu0 %539
        %541 = vadd.xlane.f32.xlu0 %v526
        %v542 = vpop.xlane.xlu0 %541
        %v543 = vmul.f32 %v504, 0.0078125
        %v544 = vmul.f32 %v506, 0.0078125
        %v545 = vmul.f32 %v508, 0.0078125
        %v546 = vmul.f32 %v510, 0.0078125
        %v547 = vmul.f32 %v512, 0.0078125
        %v548 = vmul.f32 %v514, 0.0078125
        %v549 = vmul.f32 %v516, 0.0078125
        %v550 = vmul.f32 %v518, 0.0078125
        %v551 = vmul.f32 %v528, 0.0078125
        %v552 = vmul.f32 %v530, 0.0078125
        %v553 = vmul.f32 %v532, 0.0078125
        %v554 = vmul.f32 %v534, 0.0078125
        %v555 = vmul.f32 %v536, 0.0078125
        %v556 = vmul.f32 %v538, 0.0078125
        %v557 = vmul.f32 %v540, 0.0078125
        %v558 = vmul.f32 %v542, 0.0078125
        %v559 = vmul.f32 %v543, %v543
        %v560 = vmul.f32 %v544, %v544
        %v561 = vmul.f32 %v545, %v545
        %v562 = vmul.f32 %v546, %v546
        %v563 = vmul.f32 %v547, %v547
        %v564 = vmul.f32 %v548, %v548
        %v565 = vmul.f32 %v549, %v549
        %v566 = vmul.f32 %v550, %v550
        %v567 = vsub.f32 %v551, %v559
        %v568 = vsub.f32 %v552, %v560
        %v569 = vsub.f32 %v553, %v561
        %v570 = vsub.f32 %v554, %v562
        %v571 = vsub.f32 %v555, %v563
        %v572 = vsub.f32 %v556, %v564
        %v573 = vsub.f32 %v557, %v565
        %v574 = vsub.f32 %v558, %v566
        %v575 = vmax.f32 %v567, 0.0
        %v576 = vmax.f32 %v568, 0.0
        %v577 = vmax.f32 %v569, 0.0
        %v578 = vmax.f32 %v570, 0.0
        %v579 = vmax.f32 %v571, 0.0
        %v580 = vmax.f32 %v572, 0.0
        %v581 = vmax.f32 %v573, 0.0
        %v582 = vmax.f32 %v574, 0.0
        %v583 = vsub.f32 %v473, %v543
        %v584 = vsub.f32 %v476, %v544
        %v585 = vsub.f32 %v481, %v545
        %v586 = vsub.f32 %v484, %v546
        %v587 = vsub.f32 %v489, %v547
        %v588 = vsub.f32 %v492, %v548
        %v589 = vsub.f32 %v497, %v549
        %v590 = vsub.f32 %v500, %v550
        %v591 = vadd.f32 %v575, 1e-05
        %v592 = vadd.f32 %v576, 1e-05
        %v593 = vadd.f32 %v577, 1e-05
        %v594 = vadd.f32 %v578, 1e-05
        %v595 = vadd.f32 %v579, 1e-05
        %v596 = vadd.f32 %v580, 1e-05
        %v597 = vadd.f32 %v581, 1e-05
        %v598 = vadd.f32 %v582, 1e-05
        %v599 = vrsqrt.pop %v591
        %v600 = vrsqrt.pop %v592
        %v601 = vrsqrt.pop %v593
        %v602 = vrsqrt.pop %v594
        %v603 = vrsqrt.pop %v595
        %v604 = vrsqrt.pop %v596
        %v605 = vrsqrt.pop %v597
        %v606 = vrsqrt.pop %v598
        %v607 = vmul.f32 %v583, %v599
        %v608 = vmul.f32 %v584, %v600
        %v609 = vmul.f32 %v585, %v601
        %v610 = vmul.f32 %v586, %v602
        %v611 = vmul.f32 %v587, %v603
        %v612 = vmul.f32 %v588, %v604
        %v613 = vmul.f32 %v589, %v605
        %v614 = vmul.f32 %v590, %v606
        %615 = vst [vmem:[%s217] sm:$0xff] %v607
        %616 = vst [vmem:[%s217 + $0x8] sm:$0xff] %v608
        %617 = vst [vmem:[%s217 + $0x10] sm:$0xff] %v609
        %618 = vst [vmem:[%s217 + $0x18] sm:$0xff] %v610
        %619 = vst [vmem:[%s217 + $0x20] sm:$0xff] %v611
        %620 = vst [vmem:[%s217 + $0x28] sm:$0xff] %v612
        %621 = vst [vmem:[%s217 + $0x30] sm:$0xff] %v613
        %622 = vst [vmem:[%s217 + $0x38] sm:$0xff] %v614
        %s623 = sand.u32 %s97, 1
        %s624 = scalar_lea.sflag [#allocation4], %s623
        %s625 = sand.u32 %s97, 1
        %s626 = smul.addr %s625, 64
        %s627 = scalar_lea.vmem [#allocation8], %s626
        // Predicated region
        $region45: #{poswise_ffn_forward.1} parent=31 // pred_check
          %p628 = pneg %p107
        $region46: #{poswise_ffn_forward.1} parent=31 // pred_check_branch
          %630 = sbr.rel (%p628) target = $region48
        $region47: #{poswise_ffn_forward.1} parent=31 // pred_region
          %s631 = smul.u32 8, %s21
          %s633 = ssub.s32 1024, 1024
          %634 = vsyncadd %s624, %s633
          %s635 = smul.addr %s631, 128
          %s636 = scalar_lea.hbm %s3, %s635
          %s637 = sshll.u32 %s627, 4
          %s638 = int_to_ptr.vmem [resolvable:$true] %s637
          %643 = dma.vmem_to_hbm [thread:$0]  %s638, 1024, %s636, %s624, 128, 128, 8
        $region48: #{poswise_ffn_forward.1} parent=31 // pred_fallthru
          _
      $region32: #{poswise_ffn_forward.1} parent=5 // pred_fallthru
        _
      %p644 = scmp.le.s32.totalorder 2, %s16
      // Predicated region
      $region49: #{poswise_ffn_forward.1} parent=5 // pred_check
        %p645 = pneg %p644
      $region50: #{poswise_ffn_forward.1} parent=5 // pred_check_branch
        %647 = sbr.rel (%p645) target = $region52
      $region51: #{poswise_ffn_forward.1} parent=5 // pred_region
        %s648 = ssub.s32 %s16, 2
        // Predicated region
        $region53: #{poswise_ffn_forward.1} parent=51 // pred_check
          %p649 = pneg %p113
        $region54: #{poswise_ffn_forward.1} parent=51 // pred_check_branch
          %651 = sbr.rel (%p649) target = $region56
        $region55: #{poswise_ffn_forward.1} parent=51 // pred_region
          %s652 = sand.u32 %s98, 1
          %s653 = scalar_lea.sflag [#allocation4], %s652
          %s654 = sand.u32 %s98, 1
          %s655 = smul.addr %s654, 64
          %s656 = scalar_lea.vmem [#allocation8], %s655
          %657 = dma.done %s653, 1024
        $region56: #{poswise_ffn_forward.1} parent=51 // pred_fallthru
          _
      $region52: #{poswise_ffn_forward.1} parent=5 // pred_fallthru
        _
    $region6: #{poswise_ffn_forward.1} parent=1 // loop_footer
      %s20 = sadd.s32 1, %s16
    $region7: #{poswise_ffn_forward.1} parent=1 // loop_footer_branch
      %15 = sbr.rel target = $region3
    $region8: #{poswise_ffn_forward.1} parent=1 // loop_exit
      _
    %658 = vsyncpa [#allocation3], 1
    %s659 = scalar_lea.sflag [#allocation3], 1
    %660 = vsyncpa %s659, 1
    %661 = vsyncpa [#allocation6], 1
    %662 = vsyncpa [#allocation4], 1
    %s663 = scalar_lea.sflag [#allocation4], 1
    %664 = vsyncpa %s663, 1

</llo_original>
